<compile_context>
chip_gen: v5e
topology: v5e:2x2
jax: 0.10.0
libtpu: 0.0.40
codegen_flags: <defaults>
</compile_context>

<pallas_src>
import functools

import jax
import jax.numpy as jnp
from jax.experimental import pallas as pl
from jax.experimental.pallas import tpu as pltpu

_MiB = 1 << 20


def _nami(x):
    # Nami activation (see TODO above): SiLU / swish.
    return x * jax.nn.sigmoid(x)


def _round_up(a, b):
    return -(-a // b) * b


def _pick_th(hidden, th):
    """Largest divisor of `hidden` <= th, preferring multiples of 128."""
    cap = min(th, hidden)
    for d in range(cap, 0, -1):
        if hidden % d == 0 and d % 128 == 0:
            return d
    for d in range(cap, 0, -1):
        if hidden % d == 0:
            return d
    return hidden


def _tpu_kind():
    try:
        return jax.devices()[0].device_kind.lower()
    except Exception:
        return ""


def _is_v7x(kind):
    return ("v7" in kind) or ("7x" in kind) or ("tpu7" in kind)


def _default_tm(kind):
    # Row tile per generation so the kernel sits above the bf16 HBM roofline:
    # v6e needs ~670 FLOP/byte -> tm~768; v7x ~311 -> 384; v5e ~240 -> 384.
    if "v6" in kind:
        return 768
    if _is_v7x(kind):
        return 384
    if "v5" in kind:
        return 384
    return 512


def _ffn_nami_kernel(x_ref, wug_ref, bug_ref, wp_ref, bp_ref, o_ref, acc_ref,
                     *, th):
    h = pl.program_id(1)

    x = x_ref[...]                                            # (tm, D), native dtype

    # Fused expansion + gate matmul over this H slab (one MXU weight stream
    # instead of two); f32 accumulation on the MXU, gating math in f32.
    h12 = (jnp.dot(x, wug_ref[...], preferred_element_type=jnp.float32)
           + bug_ref[...])                                    # (tm, 2*th)
    h1 = h12[:, :th]
    h2 = h12[:, th:]
    gated = h1 * _nami(h2)

    # Partial projection of this H slab, accumulated in f32 scratch.
    partial = jnp.dot(gated.astype(wp_ref.dtype), wp_ref[...],
                      preferred_element_type=jnp.float32)

    @pl.when(h == 0)
    def _():
        acc_ref[...] = partial          # first slab writes; no zero-init pass

    @pl.when(h != 0)
    def _():
        acc_ref[...] += partial

    @pl.when(h == pl.num_programs(1) - 1)
    def _():
        o_ref[...] = (acc_ref[...] + bp_ref[...]).astype(o_ref.dtype)


def ffn_nami(x, wfc, bfc, wg, bg, wp, bp, *, tm=None, th=256,
             vmem_limit_bytes=None):
    """Gated FFN: proj((x@Wfc+bfc) * Nami(x@Wg+bg)) + bp.

    x: [B, S, D]. Weights pre-transposed: wfc/wg [D, 4D], wp [4D, D]."""
    B, S, D = x.shape
    H = wfc.shape[1]
    M = B * S

    kind = _tpu_kind()
    is_v7x = _is_v7x(kind)
    if tm is None:
        tm = _default_tm(kind)

    # On v7x keep at least 2 row tiles so the "parallel" M axis can actually
    # shard across the 2 TensorCores.
    if is_v7x and M > 256:
        tm = min(tm, max(128, _round_up(-(-M // 2), 128)))

    # Row tile: shrunk (8-aligned) for tiny inputs, MXU-aligned for real ones.
    tm_eff = min(tm, _round_up(M, 8))
    # Hidden tile: largest divisor of H <= th (prefers 128-multiples).
    th_eff = _pick_th(H, th)
    n_h = H // th_eff

    Mp = _round_up(M, tm_eff)
    n_m = Mp // tm_eff

    x2 = x.reshape(M, D)
    if Mp != M:
        x2 = jnp.pad(x2, ((0, Mp - M), (0, 0)))

    # Fuse fc + gate weights/biases, interleaved per H slab, so block h of the
    # fused array is [Wfc_slab_h | Wg_slab_h] (one contiguous DMA + one dot).
    wug = jnp.concatenate(
        [wfc.reshape(D, n_h, 1, th_eff), wg.reshape(D, n_h, 1, th_eff)],
        axis=2).reshape(D, 2 * H)
    bug = jnp.concatenate(
        [bfc.reshape(1, n_h, 1, th_eff), bg.reshape(1, n_h, 1, th_eff)],
        axis=2).reshape(1, 2 * H)
    bp2 = bp.reshape(1, D)

    # VMEM budget from the live tile footprint (x single-buffered, weights and
    # output double-buffered, f32 accumulator) + headroom; capped below v7x's
    # 64 MiB per-TC VMEM.
    itm_x = x.dtype.itemsize
    itm_w = wfc.dtype.itemsize
    footprint = (tm_eff * D * itm_x                 # x tile (single-buffered)
                 + D * (2 * th_eff) * itm_w * 2     # fused up/gate slab x2
                 + 8 * (2 * th_eff) * 4 * 2         # fused bias (padded)
                 + th_eff * D * itm_w * 2           # proj weight slab x2
                 + 8 * D * 4 * 2                    # proj bias (padded)
                 + tm_eff * D * itm_x * 2           # output tile x2
                 + tm_eff * D * 4)                  # f32 accumulator scratch
    if vmem_limit_bytes is None:
        cap = 56 * _MiB if is_v7x else 100 * _MiB
        vmem_limit_bytes = min(cap,
                               max(32 * _MiB, int(footprint * 1.15) + 4 * _MiB))

    # HBM traffic: weights are re-streamed once per row tile.
    weight_bytes = (wug.size * wug.dtype.itemsize
                    + bug.size * bug.dtype.itemsize
                    + wp.size * wp.dtype.itemsize
                    + bp2.size * bp2.dtype.itemsize)
    bytes_accessed = (x2.size * x2.dtype.itemsize
                      + n_m * weight_bytes
                      + Mp * D * x.dtype.itemsize)
    cost = pl.CostEstimate(flops=6 * Mp * D * H,       # 3 matmuls, 2*M*D*H each
                           transcendentals=Mp * H,     # sigmoid
                           bytes_accessed=bytes_accessed)

    kernel = functools.partial(_ffn_nami_kernel, th=th_eff)

    def _call(single_buffer_x):
        x_kwargs = {"pipeline_mode": pl.Buffered(1)} if single_buffer_x else {}
        return pl.pallas_call(
            kernel,
            out_shape=jax.ShapeDtypeStruct((Mp, D), x.dtype),
            grid_spec=pltpu.PrefetchScalarGridSpec(
                num_scalar_prefetch=0,
                grid=(n_m, n_h),
                in_specs=[
                    # x rows: resident over the inner h axis -> single buffer.
                    pl.BlockSpec((tm_eff, D), lambda i, h: (i, 0), **x_kwargs),
                    pl.BlockSpec((D, 2 * th_eff), lambda i, h: (0, h)),  # Wfc|Wg slab
                    pl.BlockSpec((1, 2 * th_eff), lambda i, h: (0, h)),  # bfc|bg slab
                    pl.BlockSpec((th_eff, D), lambda i, h: (h, 0)),      # Wproj slab
                    pl.BlockSpec((1, D), lambda i, h: (0, 0)),           # bproj
                ],
                out_specs=pl.BlockSpec((tm_eff, D), lambda i, h: (i, 0)),
                scratch_shapes=[pltpu.VMEM((tm_eff, D), jnp.float32)],
            ),
            compiler_params=pltpu.CompilerParams(
                dimension_semantics=("parallel", "arbitrary"),
                vmem_limit_bytes=vmem_limit_bytes),
            cost_estimate=cost,
        )(x2, wug, bug, wp, bp2)

    try:
        out = _call(True)
    except Exception:
        # TODO(synk): fallback in case pipeline_mode=pl.Buffered(1) is not
        # supported by this jax version; identical semantics, double-buffered.
        out = _call(False)

    if Mp != M:
        out = out[:M]
    return out.reshape(B, S, D)


def _init_linear(key, in_f, out_f):
    """Deterministic init mimicking nn.Linear (uniform +-1/sqrt(in_f)).

    Returns weight pre-transposed as [in_f, out_f] and bias [out_f]."""
    kw, kb = jax.random.split(key)
    bound = 1.0 / jnp.sqrt(in_f)
    w = jax.random.uniform(kw, (in_f, out_f), jnp.float32, -bound, bound)
    b = jax.random.uniform(kb, (out_f,), jnp.float32, -bound, bound)
    return w, b


def _reference(x, wfc, bfc, wg, bg, wp, bp):
    h1 = x @ wfc + bfc
    h2 = x @ wg + bg
    return (h1 * _nami(h2)) @ wp + bp


if __name__ == "__main__":
    root = jax.random.PRNGKey(0)

    # --- primary small config: batch=2, seq=8, dim=32 (hidden = 4*dim = 128) ---
    B, S, D = 2, 8, 32
    H = 4 * D
    kx, kfc, kg, kp = jax.random.split(root, 4)
    x = jax.random.normal(kx, (B, S, D), jnp.float32)
    wfc, bfc = _init_linear(kfc, D, H)
    wg, bg = _init_linear(kg, D, H)
    wp, bp = _init_linear(kp, H, D)

    out = jax.block_until_ready(ffn_nami(x, wfc, bfc, wg, bg, wp, bp))
    ref = _reference(x, wfc, bfc, wg, bg, wp, bp)
    assert out.shape == (B, S, D)
    assert jnp.allclose(out, ref, atol=1e-4, rtol=1e-4), "f32 mismatch vs reference"

    # Ragged row count (exercises the padded-tail path, no divisibility assert).
    x_r = x[:, :5]
    out_r = jax.block_until_ready(ffn_nami(x_r, wfc, bfc, wg, bg, wp, bp))
    ref_r = _reference(x_r, wfc, bfc, wg, bg, wp, bp)
    assert out_r.shape == (B, 5, D)
    assert jnp.allclose(out_r, ref_r, atol=1e-4, rtol=1e-4), "ragged mismatch vs reference"

    # bf16 operands / f32 accumulation (how this kernel is meant to run at scale).
    out_bf16 = jax.block_until_ready(
        ffn_nami(x.astype(jnp.bfloat16),
                 wfc.astype(jnp.bfloat16), bfc,
                 wg.astype(jnp.bfloat16), bg,
                 wp.astype(jnp.bfloat16), bp))
    out_bf16_f32 = out_bf16.astype(jnp.float32)
    assert out_bf16.shape == (B, S, D)
    assert bool(jnp.all(jnp.isfinite(out_bf16_f32)))
    assert jnp.allclose(out_bf16_f32, ref, atol=1e-1, rtol=1e-1), "bf16 mismatch vs reference"

    # --- second config exercising the multi-slab (n_h > 1) accumulator path ---
    B2, S2, D2 = 2, 8, 64
    H2 = 4 * D2
    k2 = jax.random.split(jax.random.PRNGKey(1), 4)
    x_2 = jax.random.normal(k2[0], (B2, S2, D2), jnp.float32)
    wfc2, bfc2 = _init_linear(k2[1], D2, H2)
    wg2, bg2 = _init_linear(k2[2], D2, H2)
    wp2, bp2 = _init_linear(k2[3], H2, D2)
    out2 = jax.block_until_ready(
        ffn_nami(x_2, wfc2, bfc2, wg2, bg2, wp2, bp2, th=128))  # n_h = 2
    ref2 = _reference(x_2, wfc2, bfc2, wg2, bg2, wp2, bp2)
    assert jnp.allclose(out2, ref2, atol=1e-4, rtol=1e-4), "multi-slab mismatch vs reference"

    print("KERNEL_OK")
</pallas_src>

<mosaic_0001>
module attributes {stable_mosaic.version = 11 : i64} {
  func.func @_ffn_nami_kernel(%arg0: i32, %arg1: i32, %arg2: memref<16x32xf32, #tpu.memory_space<vmem>>, %arg3: memref<32x256xf32, #tpu.memory_space<vmem>>, %arg4: memref<1x256xf32, #tpu.memory_space<vmem>>, %arg5: memref<128x32xf32, #tpu.memory_space<vmem>>, %arg6: memref<1x32xf32, #tpu.memory_space<vmem>>, %arg7: memref<16x32xf32, #tpu.memory_space<vmem>>, %arg8: memref<16x32xf32, #tpu.memory_space<vmem>>) attributes {dimension_semantics = [#tpu.dimension_semantics<parallel>, #tpu.dimension_semantics<arbitrary>], iteration_bounds = array<i64: 1, 1>, scalar_prefetch = 0 : i64, scratch_operands = 1 : i64, tpu.core_type = #tpu.core_type<tc>, window_params = [{pipeline_mode = #tpu.pipeline_mode<synchronous>, transform_indices = @transform_0, window_bounds = array<i64: 16, 32>}, {transform_indices = @transform_1, window_bounds = array<i64: 32, 256>}, {transform_indices = @transform_2, window_bounds = array<i64: 1, 256>}, {transform_indices = @transform_3, window_bounds = array<i64: 128, 32>}, {pipeline_mode = #tpu.pipeline_mode<synchronous>, transform_indices = @transform_4, window_bounds = array<i64: 1, 32>}, {transform_indices = @transform_5, window_bounds = array<i64: 16, 32>}]} {
    %c0 = arith.constant 0 : index
    %c0_0 = arith.constant 0 : index
    %0 = vector.load %arg2[%c0, %c0_0] : memref<16x32xf32, #tpu.memory_space<vmem>>, vector<16x32xf32>
    %c0_1 = arith.constant 0 : index
    %c0_2 = arith.constant 0 : index
    %1 = vector.load %arg3[%c0_1, %c0_2] : memref<32x256xf32, #tpu.memory_space<vmem>>, vector<32x256xf32>
    %cst = arith.constant dense<0.000000e+00> : vector<16x256xf32>
    %2 = tpu.matmul %0, %1, %cst {dimension_numbers = #tpu.dot_dimension_numbers<[1], [0], [0], [1], [0, 0, 1, 1], [], []>} : vector<16x32xf32>, vector<32x256xf32>, vector<16x256xf32> -> vector<16x256xf32>
    %c0_3 = arith.constant 0 : index
    %c0_4 = arith.constant 0 : index
    %3 = vector.load %arg4[%c0_3, %c0_4] : memref<1x256xf32, #tpu.memory_space<vmem>>, vector<1x256xf32>
    %4 = vector.broadcast %3 : vector<1x256xf32> to vector<16x256xf32>
    %5 = arith.addf %2, %4 : vector<16x256xf32>
    %6 = vector.extract_strided_slice %5 {offsets = [0, 0], sizes = [16, 128], strides = [1, 1]} : vector<16x256xf32> to vector<16x128xf32>
    %7 = vector.extract_strided_slice %5 {offsets = [0, 128], sizes = [16, 128], strides = [1, 1]} : vector<16x256xf32> to vector<16x128xf32>
    %8 = arith.negf %7 : vector<16x128xf32>
    %9 = math.exp %8 : vector<16x128xf32>
    %cst_5 = arith.constant 1.000000e+00 : f32
    %10 = vector.broadcast %cst_5 : f32 to vector<16x128xf32>
    %11 = arith.addf %10, %9 : vector<16x128xf32>
    %12 = arith.divf %10, %11 : vector<16x128xf32>
    %13 = arith.mulf %7, %12 : vector<16x128xf32>
    %14 = arith.mulf %6, %13 : vector<16x128xf32>
    %c0_6 = arith.constant 0 : index
    %c0_7 = arith.constant 0 : index
    %15 = vector.load %arg5[%c0_6, %c0_7] : memref<128x32xf32, #tpu.memory_space<vmem>>, vector<128x32xf32>
    %cst_8 = arith.constant dense<0.000000e+00> : vector<16x32xf32>
    %16 = tpu.matmul %14, %15, %cst_8 {dimension_numbers = #tpu.dot_dimension_numbers<[1], [0], [0], [1], [0, 0, 1, 1], [], []>} : vector<16x128xf32>, vector<128x32xf32>, vector<16x32xf32> -> vector<16x32xf32>
    %c0_i32 = arith.constant 0 : i32
    %17 = arith.cmpi eq, %arg1, %c0_i32 : i32
    %18 = arith.extui %17 : i1 to i32
    %c0_i32_9 = arith.constant 0 : i32
    %19 = arith.cmpi ne, %18, %c0_i32_9 : i32
    scf.if %19 {
      %c0_14 = arith.constant 0 : index
      %c0_15 = arith.constant 0 : index
      %26 = vector.load %arg8[%c0_14, %c0_15] : memref<16x32xf32, #tpu.memory_space<vmem>>, vector<16x32xf32>
      tpu.vector_store %arg8[%c0_14, %c0_15], %16 {strides = array<i32>} : memref<16x32xf32, #tpu.memory_space<vmem>>, vector<16x32xf32>,
    } else {
    }
    %c0_i32_10 = arith.constant 0 : i32
    %20 = arith.cmpi ne, %arg1, %c0_i32_10 : i32
    %21 = arith.extui %20 : i1 to i32
    %c0_i32_11 = arith.constant 0 : i32
    %22 = arith.cmpi ne, %21, %c0_i32_11 : i32
    scf.if %22 {
      %c0_14 = arith.constant 0 : index
      %c0_15 = arith.constant 0 : index
      %26 = vector.load %arg8[%c0_14, %c0_15] : memref<16x32xf32, #tpu.memory_space<vmem>>, vector<16x32xf32>
      %27 = arith.addf %26, %16 : vector<16x32xf32>
      %c0_16 = arith.constant 0 : index
      %c0_17 = arith.constant 0 : index
      %28 = vector.load %arg8[%c0_16, %c0_17] : memref<16x32xf32, #tpu.memory_space<vmem>>, vector<16x32xf32>
      tpu.vector_store %arg8[%c0_16, %c0_17], %27 {strides = array<i32>} : memref<16x32xf32, #tpu.memory_space<vmem>>, vector<16x32xf32>,
    } else {
    }
    %c0_i32_12 = arith.constant 0 : i32
    %23 = arith.cmpi eq, %arg1, %c0_i32_12 : i32
    %24 = arith.extui %23 : i1 to i32
    %c0_i32_13 = arith.constant 0 : i32
    %25 = arith.cmpi ne, %24, %c0_i32_13 : i32
    scf.if %25 {
      %c0_14 = arith.constant 0 : index
      %c0_15 = arith.constant 0 : index
      %26 = vector.load %arg8[%c0_14, %c0_15] : memref<16x32xf32, #tpu.memory_space<vmem>>, vector<16x32xf32>
      %c0_16 = arith.constant 0 : index
      %c0_17 = arith.constant 0 : index
      %27 = vector.load %arg6[%c0_16, %c0_17] : memref<1x32xf32, #tpu.memory_space<vmem>>, vector<1x32xf32>
      %28 = vector.broadcast %27 : vector<1x32xf32> to vector<16x32xf32>
      %29 = arith.addf %26, %28 : vector<16x32xf32>
      %c0_18 = arith.constant 0 : index
      %c0_19 = arith.constant 0 : index
      %30 = vector.load %arg7[%c0_18, %c0_19] : memref<16x32xf32, #tpu.memory_space<vmem>>, vector<16x32xf32>
      tpu.vector_store %arg7[%c0_18, %c0_19], %29 {strides = array<i32>} : memref<16x32xf32, #tpu.memory_space<vmem>>, vector<16x32xf32>,
    } else {
    }
    return
  }
  func.func @transform_0(%arg0: i32, %arg1: i32) -> (i32, i32) {
    %c0_i32 = arith.constant 0 : i32
    %c0_i32_0 = arith.constant 0 : i32
    return %arg0, %c0_i32 : i32, i32
  }
  func.func @transform_1(%arg0: i32, %arg1: i32) -> (i32, i32) {
    %c0_i32 = arith.constant 0 : i32
    %c0_i32_0 = arith.constant 0 : i32
    return %c0_i32, %arg1 : i32, i32
  }
  func.func @transform_2(%arg0: i32, %arg1: i32) -> (i32, i32) {
    %c0_i32 = arith.constant 0 : i32
    %c0_i32_0 = arith.constant 0 : i32
    return %c0_i32, %arg1 : i32, i32
  }
  func.func @transform_3(%arg0: i32, %arg1: i32) -> (i32, i32) {
    %c0_i32 = arith.constant 0 : i32
    %c0_i32_0 = arith.constant 0 : i32
    return %arg1, %c0_i32 : i32, i32
  }
  func.func @transform_4(%arg0: i32, %arg1: i32) -> (i32, i32) {
    %c0_i32 = arith.constant 0 : i32
    %c0_i32_0 = arith.constant 0 : i32
    %c0_i32_1 = arith.constant 0 : i32
    return %c0_i32, %c0_i32_0 : i32, i32
  }
  func.func @transform_5(%arg0: i32, %arg1: i32) -> (i32, i32) {
    %c0_i32 = arith.constant 0 : i32
    %c0_i32_0 = arith.constant 0 : i32
    return %arg0, %c0_i32 : i32, i32
  }
}

module attributes {stable_mosaic.version = 11 : i64} {
  func.func @_ffn_nami_kernel(%arg0: i32, %arg1: i32, %arg2: memref<16x32xf32, #tpu.memory_space<vmem>>, %arg3: memref<32x256xf32, #tpu.memory_space<vmem>>, %arg4: memref<1x256xf32, #tpu.memory_space<vmem>>, %arg5: memref<128x32xf32, #tpu.memory_space<vmem>>, %arg6: memref<1x32xf32, #tpu.memory_space<vmem>>, %arg7: memref<16x32xf32, #tpu.memory_space<vmem>>, %arg8: memref<16x32xf32, #tpu.memory_space<vmem>>) attributes {dimension_semantics = [#tpu.dimension_semantics<parallel>, #tpu.dimension_semantics<arbitrary>], iteration_bounds = array<i64: 1, 1>, scalar_prefetch = 0 : i64, scratch_operands = 1 : i64, tpu.core_type = #tpu.core_type<tc>, window_params = [{transform_indices = @transform_0, window_bounds = array<i64: 16, 32>}, {transform_indices = @transform_1, window_bounds = array<i64: 32, 256>}, {transform_indices = @transform_2, window_bounds = array<i64: 1, 256>}, {transform_indices = @transform_3, window_bounds = array<i64: 128, 32>}, {pipeline_mode = #tpu.pipeline_mode<synchronous>, transform_indices = @transform_4, window_bounds = array<i64: 1, 32>}, {transform_indices = @transform_5, window_bounds = array<i64: 16, 32>}]} {
    %c0 = arith.constant 0 : index
    %c0_0 = arith.constant 0 : index
    %0 = vector.load %arg2[%c0, %c0_0] : memref<16x32xf32, #tpu.memory_space<vmem>>, vector<16x32xf32>
    %c0_1 = arith.constant 0 : index
    %c0_2 = arith.constant 0 : index
    %1 = vector.load %arg3[%c0_1, %c0_2] : memref<32x256xf32, #tpu.memory_space<vmem>>, vector<32x256xf32>
    %cst = arith.constant dense<0.000000e+00> : vector<16x256xf32>
    %2 = tpu.matmul %0, %1, %cst {dimension_numbers = #tpu.dot_dimension_numbers<[1], [0], [0], [1], [0, 0, 1, 1], [], []>} : vector<16x32xf32>, vector<32x256xf32>, vector<16x256xf32> -> vector<16x256xf32>
    %c0_3 = arith.constant 0 : index
    %c0_4 = arith.constant 0 : index
    %3 = vector.load %arg4[%c0_3, %c0_4] : memref<1x256xf32, #tpu.memory_space<vmem>>, vector<1x256xf32>
    %4 = vector.broadcast %3 : vector<1x256xf32> to vector<16x256xf32>
    %5 = arith.addf %2, %4 : vector<16x256xf32>
    %6 = vector.extract_strided_slice %5 {offsets = [0, 0], sizes = [16, 128], strides = [1, 1]} : vector<16x256xf32> to vector<16x128xf32>
    %7 = vector.extract_strided_slice %5 {offsets = [0, 128], sizes = [16, 128], strides = [1, 1]} : vector<16x256xf32> to vector<16x128xf32>
    %8 = arith.negf %7 : vector<16x128xf32>
    %9 = math.exp %8 : vector<16x128xf32>
    %cst_5 = arith.constant 1.000000e+00 : f32
    %10 = vector.broadcast %cst_5 : f32 to vector<16x128xf32>
    %11 = arith.addf %10, %9 : vector<16x128xf32>
    %12 = arith.divf %10, %11 : vector<16x128xf32>
    %13 = arith.mulf %7, %12 : vector<16x128xf32>
    %14 = arith.mulf %6, %13 : vector<16x128xf32>
    %c0_6 = arith.constant 0 : index
    %c0_7 = arith.constant 0 : index
    %15 = vector.load %arg5[%c0_6, %c0_7] : memref<128x32xf32, #tpu.memory_space<vmem>>, vector<128x32xf32>
    %cst_8 = arith.constant dense<0.000000e+00> : vector<16x32xf32>
    %16 = tpu.matmul %14, %15, %cst_8 {dimension_numbers = #tpu.dot_dimension_numbers<[1], [0], [0], [1], [0, 0, 1, 1], [], []>} : vector<16x128xf32>, vector<128x32xf32>, vector<16x32xf32> -> vector<16x32xf32>
    %c0_i32 = arith.constant 0 : i32
    %17 = arith.cmpi eq, %arg1, %c0_i32 : i32
    %18 = arith.extui %17 : i1 to i32
    %c0_i32_9 = arith.constant 0 : i32
    %19 = arith.cmpi ne, %18, %c0_i32_9 : i32
    scf.if %19 {
      %c0_14 = arith.constant 0 : index
      %c0_15 = arith.constant 0 : index
      %26 = vector.load %arg8[%c0_14, %c0_15] : memref<16x32xf32, #tpu.memory_space<vmem>>, vector<16x32xf32>
      tpu.vector_store %arg8[%c0_14, %c0_15], %16 {strides = array<i32>} : memref<16x32xf32, #tpu.memory_space<vmem>>, vector<16x32xf32>,
    } else {
    }
    %c0_i32_10 = arith.constant 0 : i32
    %20 = arith.cmpi ne, %arg1, %c0_i32_10 : i32
    %21 = arith.extui %20 : i1 to i32
    %c0_i32_11 = arith.constant 0 : i32
    %22 = arith.cmpi ne, %21, %c0_i32_11 : i32
    scf.if %22 {
      %c0_14 = arith.constant 0 : index
      %c0_15 = arith.constant 0 : index
      %26 = vector.load %arg8[%c0_14, %c0_15] : memref<16x32xf32, #tpu.memory_space<vmem>>, vector<16x32xf32>
      %27 = arith.addf %26, %16 : vector<16x32xf32>
      %c0_16 = arith.constant 0 : index
      %c0_17 = arith.constant 0 : index
      %28 = vector.load %arg8[%c0_16, %c0_17] : memref<16x32xf32, #tpu.memory_space<vmem>>, vector<16x32xf32>
      tpu.vector_store %arg8[%c0_16, %c0_17], %27 {strides = array<i32>} : memref<16x32xf32, #tpu.memory_space<vmem>>, vector<16x32xf32>,
    } else {
    }
    %c0_i32_12 = arith.constant 0 : i32
    %23 = arith.cmpi eq, %arg1, %c0_i32_12 : i32
    %24 = arith.extui %23 : i1 to i32
    %c0_i32_13 = arith.constant 0 : i32
    %25 = arith.cmpi ne, %24, %c0_i32_13 : i32
    scf.if %25 {
      %c0_14 = arith.constant 0 : index
      %c0_15 = arith.constant 0 : index
      %26 = vector.load %arg8[%c0_14, %c0_15] : memref<16x32xf32, #tpu.memory_space<vmem>>, vector<16x32xf32>
      %c0_16 = arith.constant 0 : index
      %c0_17 = arith.constant 0 : index
      %27 = vector.load %arg6[%c0_16, %c0_17] : memref<1x32xf32, #tpu.memory_space<vmem>>, vector<1x32xf32>
      %28 = vector.broadcast %27 : vector<1x32xf32> to vector<16x32xf32>
      %29 = arith.addf %26, %28 : vector<16x32xf32>
      %c0_18 = arith.constant 0 : index
      %c0_19 = arith.constant 0 : index
      %30 = vector.load %arg7[%c0_18, %c0_19] : memref<16x32xf32, #tpu.memory_space<vmem>>, vector<16x32xf32>
      tpu.vector_store %arg7[%c0_18, %c0_19], %29 {strides = array<i32>} : memref<16x32xf32, #tpu.memory_space<vmem>>, vector<16x32xf32>,
    } else {
    }
    return
  }
  func.func @transform_0(%arg0: i32, %arg1: i32) -> (i32, i32) {
    %c0_i32 = arith.constant 0 : i32
    %c0_i32_0 = arith.constant 0 : i32
    return %arg0, %c0_i32 : i32, i32
  }
  func.func @transform_1(%arg0: i32, %arg1: i32) -> (i32, i32) {
    %c0_i32 = arith.constant 0 : i32
    %c0_i32_0 = arith.constant 0 : i32
    return %c0_i32, %arg1 : i32, i32
  }
  func.func @transform_2(%arg0: i32, %arg1: i32) -> (i32, i32) {
    %c0_i32 = arith.constant 0 : i32
    %c0_i32_0 = arith.constant 0 : i32
    return %c0_i32, %arg1 : i32, i32
  }
  func.func @transform_3(%arg0: i32, %arg1: i32) -> (i32, i32) {
    %c0_i32 = arith.constant 0 : i32
    %c0_i32_0 = arith.constant 0 : i32
    return %arg1, %c0_i32 : i32, i32
  }
  func.func @transform_4(%arg0: i32, %arg1: i32) -> (i32, i32) {
    %c0_i32 = arith.constant 0 : i32
    %c0_i32_0 = arith.constant 0 : i32
    %c0_i32_1 = arith.constant 0 : i32
    return %c0_i32, %c0_i32_0 : i32, i32
  }
  func.func @transform_5(%arg0: i32, %arg1: i32) -> (i32, i32) {
    %c0_i32 = arith.constant 0 : i32
    %c0_i32_0 = arith.constant 0 : i32
    return %arg0, %c0_i32 : i32, i32
  }
}

</mosaic_0001>

<llo_original>
// kernel: tpu_custom_call.1
$region0: #{tpu_custom_call.1}
  #allocation0 [shape = 'u32[]', space=smem, size = 0x4, offset = 0x4, fixed_abs, tag = 'smem constant byte address 0x4 - core index']
  #allocation1 [shape = 'u32[72,128]{1,0:T(1,128)}', space=vmem, size = 0x9000, scoped, tag = 'internal scratch']
  #allocation2 [shape = 'f32[16,32]{1,0:T(8,128)}', space=vmem, size = 0x2000, scoped, tag = 'scratch operand']
  %s0 = inlined_call_operand.vmem [shape: f32[16,32], index: 0, kind: input, shape index: {}]
  %s1 = inlined_call_operand.vmem [shape: f32[32,256], index: 1, kind: input, shape index: {}]
  %s2 = inlined_call_operand.vmem [shape: f32[1,256], index: 2, kind: input, shape index: {}]
  %s3 = inlined_call_operand.vmem [shape: f32[128,32], index: 3, kind: input, shape index: {}]
  %s4 = inlined_call_operand.vmem [shape: f32[1,32], index: 4, kind: input, shape index: {}]
  %s5 = inlined_call_operand.hbm [shape: f32[16,32], index: 5, kind: output, shape index: {}]
  %s6 = sld [smem:[#allocation0]]
  $region42: #{tpu_custom_call.1} parent=0
    _
  %s8 = ssub.s32 1, %s6
  %s9 = scalar_select 0, %s8, %s6
  $region1: #{tpu_custom_call.1} parent=0
    #allocation3 [shape = 'u8[8192]{0}', space=vmem, size = 0x2000, scoped, tag = 'output window, operand 0, single buffered']
    #allocation4 [shape = 's32[1]{0}', space=sflag, size = 0x4, scoped, tag = 'scoped memory for tpu_custom_call.1']
    %10 = vsyncpa [#allocation4], 0
    // Predicated region
    $region2: #{tpu_custom_call.1} parent=1 // pred_check
      _
    $region3: #{tpu_custom_call.1} parent=1 // pred_check_branch
      %12 = sbr.rel (0) target = $region5
    $region4: #{tpu_custom_call.1} parent=1 // pred_region
      _
    $region5: #{tpu_custom_call.1} parent=1 // pred_fallthru
      _
    // Predicated region
    $region6: #{tpu_custom_call.1} parent=1 // pred_check
      _
    $region7: #{tpu_custom_call.1} parent=1 // pred_check_branch
      %14 = sbr.rel (0) target = $region9
    $region8: #{tpu_custom_call.1} parent=1 // pred_region
      _
    $region9: #{tpu_custom_call.1} parent=1 // pred_fallthru
      _
    // Predicated region
    $region10: #{tpu_custom_call.1} parent=1 // pred_check
      _
    $region11: #{tpu_custom_call.1} parent=1 // pred_check_branch
      %16 = sbr.rel (0) target = $region13
    $region12: #{tpu_custom_call.1} parent=1 // pred_region
      _
    $region13: #{tpu_custom_call.1} parent=1 // pred_fallthru
      _
    // Predicated region
    $region14: #{tpu_custom_call.1} parent=1 // pred_check
      _
    $region15: #{tpu_custom_call.1} parent=1 // pred_check_branch
      %18 = sbr.rel (0) target = $region17
    $region16: #{tpu_custom_call.1} parent=1 // pred_region
      _
    $region17: #{tpu_custom_call.1} parent=1 // pred_fallthru
      _
    // Predicated region
    $region18: #{tpu_custom_call.1} parent=1 // pred_check
      _
    $region19: #{tpu_custom_call.1} parent=1 // pred_check_branch
      %20 = sbr.rel (0) target = $region21
    $region20: #{tpu_custom_call.1} parent=1 // pred_region
      _
    $region21: #{tpu_custom_call.1} parent=1 // pred_fallthru
      _
    %v21 = vld [vmem:[%s0] sm:$0xff]
    %v22 = vld [vmem:[%s0 + $0x8] sm:$0xff]
    %v23 = vld [vmem:[%s1] sm:$0xff]
    %v24 = vld [vmem:[%s1 + $0x8] sm:$0xff]
    %v25 = vld [vmem:[%s1 + $0x10] sm:$0xff]
    %v26 = vld [vmem:[%s1 + $0x18] sm:$0xff]
    %v27 = vld [vmem:[%s1 + $0x20] sm:$0xff]
    %v28 = vld [vmem:[%s1 + $0x28] sm:$0xff]
    %v29 = vld [vmem:[%s1 + $0x30] sm:$0xff]
    %v30 = vld [vmem:[%s1 + $0x38] sm:$0xff]
    %v31 = vld [vmem:[%s2] sm:$0x3]
    %v33 = vperm.slane %v31, 0
    %v34 = vperm.slane %v31, 1
    %vm37 = vcmask 261120
    %v39 = vsel %vm37, %v21, 0
    %v42 = vsel %vm37, %v22, 0
    %44 = vmatpush.msra.mxu0 0.0
    %45 = vmatpush.msra.mxu0 0.0
    %46 = vmatpush.msra.mxu0 0.0
    %47 = vmatpush.msra.mxu0 0.0
    %48 = vmatpush.msra.mxu0 0.0
    %49 = vmatpush.msra.mxu0 0.0
    %50 = vmatpush.msra.mxu0 0.0
    %51 = vmatpush.msra.mxu0 0.0
    %52 = vmatpush.msra.mxu0 0.0
    %53 = vmatpush.msra.mxu0 0.0
    %54 = vmatpush.msra.mxu0 0.0
    %55 = vmatpush.msra.mxu0 0.0
    %56 = vmatpush.msra.mxu0 %v29
    %57 = vmatpush.msra.mxu0 %v27
    %58 = vmatpush.msra.mxu0 %v25
    %59 = vmatpush.msra.mxu0 %v23
    %60 = vmatmul.f32.gmra.mxu0 %v39
    %v61 = vpop.f32.mrf.mxu0
    %v62 = vadd.f32 %v33, %v61
    %63 = vmatmul.f32.gmra.mxu0 %v42
    %v64 = vpop.f32.mrf.mxu0
    %v65 = vadd.f32 %v33, %v64
    %66 = vdwg.mxu0
    %67 = vmatpush.msra.mxu0 0.0
    %68 = vmatpush.msra.mxu0 0.0
    %69 = vmatpush.msra.mxu0 0.0
    %70 = vmatpush.msra.mxu0 0.0
    %71 = vmatpush.msra.mxu0 0.0
    %72 = vmatpush.msra.mxu0 0.0
    %73 = vmatpush.msra.mxu0 0.0
    %74 = vmatpush.msra.mxu0 0.0
    %75 = vmatpush.msra.mxu0 0.0
    %76 = vmatpush.msra.mxu0 0.0
    %77 = vmatpush.msra.mxu0 0.0
    %78 = vmatpush.msra.mxu0 0.0
    %79 = vmatpush.msra.mxu0 %v30
    %80 = vmatpush.msra.mxu0 %v28
    %81 = vmatpush.msra.mxu0 %v26
    %82 = vmatpush.msra.mxu0 %v24
    %83 = vmatmul.f32.gmra.mxu0 %v39
    %v84 = vpop.f32.mrf.mxu0
    %v85 = vadd.f32 %v34, %v84
    %86 = vmatmul.f32.gmra.mxu0 %v42
    %v87 = vpop.f32.mrf.mxu0
    %v88 = vadd.f32 %v34, %v87
    %89 = vdwg.mxu0
    %v90 = vxor.u32 %v85, 2147483648
    %v91 = vxor.u32 %v88, 2147483648
    %v92 = vmul.f32 %v90, 1.442695
    %v93 = vpow.pop %v92
    %v94 = vmul.f32 %v91, 1.442695
    %v95 = vpow.pop %v94
    %v96 = vadd.f32 %v93, 1.0
    %v97 = vadd.f32 %v95, 1.0
    %v98 = vrcp.pop %v96
    %v99 = vmul.f32 %v96, %v98
    %v100 = vsub.f32 1.0, %v99
    %v101 = vmul.f32 %v98, %v100
    %v102 = vadd.f32 %v98, %v101
    %vm103 = vweird.f32 %v96
    %vm104 = vweird.f32 %v98
    %vm105 = vmor %vm103, %vm104
    %v106 = vsel %vm105, %v98, %v102
    %v107 = vand.u32 2147483647, %v96
    %vm108 = vcmp.eq.f32.partialorder %v107, 8.507059e+37
    %v109 = vand.u32 %v96, 2147483648
    %v110 = vor.u32 1.1754944e-38, %v109
    %v111 = vsel %vm108, %v110, %v106
    %v112 = vmul.f32 1.0, %v111
    %v113 = vrcp.pop %v97
    %v114 = vmul.f32 %v97, %v113
    %v115 = vsub.f32 1.0, %v114
    %v116 = vmul.f32 %v113, %v115
    %v117 = vadd.f32 %v113, %v116
    %vm118 = vweird.f32 %v97
    %vm119 = vweird.f32 %v113
    %vm120 = vmor %vm118, %vm119
    %v121 = vsel %vm120, %v113, %v117
    %v122 = vand.u32 2147483647, %v97
    %vm123 = vcmp.eq.f32.partialorder %v122, 8.507059e+37
    %v124 = vand.u32 %v97, 2147483648
    %v125 = vor.u32 1.1754944e-38, %v124
    %v126 = vsel %vm123, %v125, %v121
    %v127 = vmul.f32 1.0, %v126
    %v128 = vmul.f32 %v85, %v112
    %v129 = vmul.f32 %v88, %v127
    %v130 = vmul.f32 %v62, %v128
    %v131 = vmul.f32 %v65, %v129
    %v132 = vld [vmem:[%s3] sm:$0xff]
    %v133 = vld [vmem:[%s3 + $0x8] sm:$0xff]
    %v134 = vld [vmem:[%s3 + $0x10] sm:$0xff]
    %v135 = vld [vmem:[%s3 + $0x18] sm:$0xff]
    %v136 = vld [vmem:[%s3 + $0x20] sm:$0xff]
    %v137 = vld [vmem:[%s3 + $0x28] sm:$0xff]
    %v138 = vld [vmem:[%s3 + $0x30] sm:$0xff]
    %v139 = vld [vmem:[%s3 + $0x38] sm:$0xff]
    %v140 = vld [vmem:[%s3 + $0x40] sm:$0xff]
    %v141 = vld [vmem:[%s3 + $0x48] sm:$0xff]
    %v142 = vld [vmem:[%s3 + $0x50] sm:$0xff]
    %v143 = vld [vmem:[%s3 + $0x58] sm:$0xff]
    %v144 = vld [vmem:[%s3 + $0x60] sm:$0xff]
    %v145 = vld [vmem:[%s3 + $0x68] sm:$0xff]
    %v146 = vld [vmem:[%s3 + $0x70] sm:$0xff]
    %v147 = vld [vmem:[%s3 + $0x78] sm:$0xff]
    %148 = vmatpush.msra.mxu0 %v147
    %149 = vmatpush.msra.mxu0 %v146
    %150 = vmatpush.msra.mxu0 %v145
    %151 = vmatpush.msra.mxu0 %v144
    %152 = vmatpush.msra.mxu0 %v143
    %153 = vmatpush.msra.mxu0 %v142
    %154 = vmatpush.msra.mxu0 %v141
    %155 = vmatpush.msra.mxu0 %v140
    %156 = vmatpush.msra.mxu0 %v139
    %157 = vmatpush.msra.mxu0 %v138
    %158 = vmatpush.msra.mxu0 %v137
    %159 = vmatpush.msra.mxu0 %v136
    %160 = vmatpush.msra.mxu0 %v135
    %161 = vmatpush.msra.mxu0 %v134
    %162 = vmatpush.msra.mxu0 %v133
    %163 = vmatpush.msra.mxu0 %v132
    %164 = vmatmul.f32.gmra.mxu0 %v130
    %v165 = vpop.f32.mrf.mxu0
    %v166 = vadd.f32 0.0, %v165
    %167 = vmatmul.f32.gmra.mxu0 %v131
    %v168 = vpop.f32.mrf.mxu0
    %v169 = vadd.f32 0.0, %v168
    %170 = vdwg.mxu0
    %p171 = scmp.eq.s32.totalorder 0, 0
    // Predicated region
    $region22: #{tpu_custom_call.1} parent=1 // pred_check
      %p172 = pneg %p171
    $region23: #{tpu_custom_call.1} parent=1 // pred_check_branch
      %174 = sbr.rel (%p172) target = $region25
    $region24: #{tpu_custom_call.1} parent=1 // pred_region
      %175 = vst.msk [vmem:[#allocation2] sm:$0xff] %vm37, %v166
      %176 = vst.msk [vmem:[#allocation2 + $0x8] sm:$0xff] %vm37, %v169
    $region25: #{tpu_custom_call.1} parent=1 // pred_fallthru
      _
    %p177 = scmp.ne.s32.totalorder 0, 0
    // Predicated region
    $region26: #{tpu_custom_call.1} parent=1 // pred_check
      %p178 = pneg %p177
    $region27: #{tpu_custom_call.1} parent=1 // pred_check_branch
      %180 = sbr.rel (%p178) target = $region29
    $region28: #{tpu_custom_call.1} parent=1 // pred_region
      %v181 = vld [vmem:[#allocation2] sm:$0xff]
      %v182 = vld [vmem:[#allocation2 + $0x8] sm:$0xff]
      %v183 = vadd.f32 %v181, %v166
      %v184 = vadd.f32 %v182, %v169
      %185 = vst.msk [vmem:[#allocation2] sm:$0xff] %vm37, %v183
      %186 = vst.msk [vmem:[#allocation2 + $0x8] sm:$0xff] %vm37, %v184
    $region29: #{tpu_custom_call.1} parent=1 // pred_fallthru
      _
    // Predicated region
    $region30: #{tpu_custom_call.1} parent=1 // pred_check
      %p187 = pneg %p171
    $region31: #{tpu_custom_call.1} parent=1 // pred_check_branch
      %189 = sbr.rel (%p187) target = $region33
    $region32: #{tpu_custom_call.1} parent=1 // pred_region
      %v190 = vld [vmem:[#allocation2] sm:$0xff]
      %v191 = vld [vmem:[#allocation2 + $0x8] sm:$0xff]
      %v192 = vld [vmem:[%s4] sm:$0x1]
      %v194 = vperm.slane %v192, 0
      %v196 = vadd.f32 %v190, %v194
      %v197 = vadd.f32 %v191, %v194
      %198 = vst.msk [vmem:[#allocation3] sm:$0xff] %vm37, %v196
      %199 = vst.msk [vmem:[#allocation3 + $0x8] sm:$0xff] %vm37, %v197
    $region33: #{tpu_custom_call.1} parent=1 // pred_fallthru
      _
    // Predicated region
    $region34: #{tpu_custom_call.1} parent=1 // pred_check
      _
    $region35: #{tpu_custom_call.1} parent=1 // pred_check_branch
      %201 = sbr.rel (0) target = $region37
    $region36: #{tpu_custom_call.1} parent=1 // pred_region
      %203 = vsyncadd [#allocation4], 0
      %s204 = sshll.u32 [#allocation3], 4
      %s205 = int_to_ptr.vmem [resolvable:$true] %s204
      %s206 = sshll.u32 %s5, 4
      %s207 = int_to_ptr.hbm [resolvable:$true] %s206
      %212 = dma.vmem_to_hbm [thread:$0]  %s205, 256, %s207, [#allocation4], 128, 128, 8
    $region37: #{tpu_custom_call.1} parent=1 // pred_fallthru
      _
    // Predicated region
    $region38: #{tpu_custom_call.1} parent=1 // pred_check
      _
    $region39: #{tpu_custom_call.1} parent=1 // pred_check_branch
      %214 = sbr.rel (0) target = $region41
    $region40: #{tpu_custom_call.1} parent=1 // pred_region
      %216 = dma.done [#allocation4], 256
    $region41: #{tpu_custom_call.1} parent=1 // pred_fallthru
      _
    %217 = vsyncpa [#allocation4], 1

// kernel: tpu_custom_call.1
$region0: #{tpu_custom_call.1}
  #allocation0 [shape = 'u32[]', space=smem, size = 0x4, offset = 0x4, fixed_abs, tag = 'smem constant byte address 0x4 - core index']
  #allocation1 [shape = 'u32[72,128]{1,0:T(1,128)}', space=vmem, size = 0x9000, scoped, tag = 'internal scratch']
  #allocation2 [shape = 'f32[16,32]{1,0:T(8,128)}', space=vmem, size = 0x2000, scoped, tag = 'scratch operand']
  %s0 = inlined_call_operand.vmem [shape: f32[16,32], index: 0, kind: input, shape index: {}]
  %s1 = inlined_call_operand.vmem [shape: f32[32,256], index: 1, kind: input, shape index: {}]
  %s2 = inlined_call_operand.vmem [shape: f32[1,256], index: 2, kind: input, shape index: {}]
  %s3 = inlined_call_operand.vmem [shape: f32[128,32], index: 3, kind: input, shape index: {}]
  %s4 = inlined_call_operand.vmem [shape: f32[1,32], index: 4, kind: input, shape index: {}]
  %s5 = inlined_call_operand.hbm [shape: f32[16,32], index: 5, kind: output, shape index: {}]
  %s6 = sld [smem:[#allocation0]]
  $region42: #{tpu_custom_call.1} parent=0
    _
  %s8 = ssub.s32 1, %s6
  %s9 = scalar_select 0, %s8, %s6
  $region1: #{tpu_custom_call.1} parent=0
    #allocation3 [shape = 'u8[8192]{0}', space=vmem, size = 0x2000, scoped, tag = 'output window, operand 0, single buffered']
    #allocation4 [shape = 's32[1]{0}', space=sflag, size = 0x4, scoped, tag = 'scoped memory for tpu_custom_call.1']
    %10 = vsyncpa [#allocation4], 0
    // Predicated region
    $region2: #{tpu_custom_call.1} parent=1 // pred_check
      _
    $region3: #{tpu_custom_call.1} parent=1 // pred_check_branch
      %12 = sbr.rel (0) target = $region5
    $region4: #{tpu_custom_call.1} parent=1 // pred_region
      _
    $region5: #{tpu_custom_call.1} parent=1 // pred_fallthru
      _
    // Predicated region
    $region6: #{tpu_custom_call.1} parent=1 // pred_check
      _
    $region7: #{tpu_custom_call.1} parent=1 // pred_check_branch
      %14 = sbr.rel (0) target = $region9
    $region8: #{tpu_custom_call.1} parent=1 // pred_region
      _
    $region9: #{tpu_custom_call.1} parent=1 // pred_fallthru
      _
    // Predicated region
    $region10: #{tpu_custom_call.1} parent=1 // pred_check
      _
    $region11: #{tpu_custom_call.1} parent=1 // pred_check_branch
      %16 = sbr.rel (0) target = $region13
    $region12: #{tpu_custom_call.1} parent=1 // pred_region
      _
    $region13: #{tpu_custom_call.1} parent=1 // pred_fallthru
      _
    // Predicated region
    $region14: #{tpu_custom_call.1} parent=1 // pred_check
      _
    $region15: #{tpu_custom_call.1} parent=1 // pred_check_branch
      %18 = sbr.rel (0) target = $region17
    $region16: #{tpu_custom_call.1} parent=1 // pred_region
      _
    $region17: #{tpu_custom_call.1} parent=1 // pred_fallthru
      _
    // Predicated region
    $region18: #{tpu_custom_call.1} parent=1 // pred_check
      _
    $region19: #{tpu_custom_call.1} parent=1 // pred_check_branch
      %20 = sbr.rel (0) target = $region21
    $region20: #{tpu_custom_call.1} parent=1 // pred_region
      _
    $region21: #{tpu_custom_call.1} parent=1 // pred_fallthru
      _
    %v21 = vld [vmem:[%s0] sm:$0xff]
    %v22 = vld [vmem:[%s0 + $0x8] sm:$0xff]
    %v23 = vld [vmem:[%s1] sm:$0xff]
    %v24 = vld [vmem:[%s1 + $0x8] sm:$0xff]
    %v25 = vld [vmem:[%s1 + $0x10] sm:$0xff]
    %v26 = vld [vmem:[%s1 + $0x18] sm:$0xff]
    %v27 = vld [vmem:[%s1 + $0x20] sm:$0xff]
    %v28 = vld [vmem:[%s1 + $0x28] sm:$0xff]
    %v29 = vld [vmem:[%s1 + $0x30] sm:$0xff]
    %v30 = vld [vmem:[%s1 + $0x38] sm:$0xff]
    %v31 = vld [vmem:[%s2] sm:$0x3]
    %v33 = vperm.slane %v31, 0
    %v34 = vperm.slane %v31, 1
    %vm37 = vcmask 261120
    %v39 = vsel %vm37, %v21, 0
    %v42 = vsel %vm37, %v22, 0
    %44 = vmatpush.msra.mxu0 0.0
    %45 = vmatpush.msra.mxu0 0.0
    %46 = vmatpush.msra.mxu0 0.0
    %47 = vmatpush.msra.mxu0 0.0
    %48 = vmatpush.msra.mxu0 0.0
    %49 = vmatpush.msra.mxu0 0.0
    %50 = vmatpush.msra.mxu0 0.0
    %51 = vmatpush.msra.mxu0 0.0
    %52 = vmatpush.msra.mxu0 0.0
    %53 = vmatpush.msra.mxu0 0.0
    %54 = vmatpush.msra.mxu0 0.0
    %55 = vmatpush.msra.mxu0 0.0
    %56 = vmatpush.msra.mxu0 %v29
    %57 = vmatpush.msra.mxu0 %v27
    %58 = vmatpush.msra.mxu0 %v25
    %59 = vmatpush.msra.mxu0 %v23
    %60 = vmatmul.f32.gmra.mxu0 %v39
    %v61 = vpop.f32.mrf.mxu0
    %v62 = vadd.f32 %v33, %v61
    %63 = vmatmul.f32.gmra.mxu0 %v42
    %v64 = vpop.f32.mrf.mxu0
    %v65 = vadd.f32 %v33, %v64
    %66 = vdwg.mxu0
    %67 = vmatpush.msra.mxu0 0.0
    %68 = vmatpush.msra.mxu0 0.0
    %69 = vmatpush.msra.mxu0 0.0
    %70 = vmatpush.msra.mxu0 0.0
    %71 = vmatpush.msra.mxu0 0.0
    %72 = vmatpush.msra.mxu0 0.0
    %73 = vmatpush.msra.mxu0 0.0
    %74 = vmatpush.msra.mxu0 0.0
    %75 = vmatpush.msra.mxu0 0.0
    %76 = vmatpush.msra.mxu0 0.0
    %77 = vmatpush.msra.mxu0 0.0
    %78 = vmatpush.msra.mxu0 0.0
    %79 = vmatpush.msra.mxu0 %v30
    %80 = vmatpush.msra.mxu0 %v28
    %81 = vmatpush.msra.mxu0 %v26
    %82 = vmatpush.msra.mxu0 %v24
    %83 = vmatmul.f32.gmra.mxu0 %v39
    %v84 = vpop.f32.mrf.mxu0
    %v85 = vadd.f32 %v34, %v84
    %86 = vmatmul.f32.gmra.mxu0 %v42
    %v87 = vpop.f32.mrf.mxu0
    %v88 = vadd.f32 %v34, %v87
    %89 = vdwg.mxu0
    %v90 = vxor.u32 %v85, 2147483648
    %v91 = vxor.u32 %v88, 2147483648
    %v92 = vmul.f32 %v90, 1.442695
    %v93 = vpow.pop %v92
    %v94 = vmul.f32 %v91, 1.442695
    %v95 = vpow.pop %v94
    %v96 = vadd.f32 %v93, 1.0
    %v97 = vadd.f32 %v95, 1.0
    %v98 = vrcp.pop %v96
    %v99 = vmul.f32 %v96, %v98
    %v100 = vsub.f32 1.0, %v99
    %v101 = vmul.f32 %v98, %v100
    %v102 = vadd.f32 %v98, %v101
    %vm103 = vweird.f32 %v96
    %vm104 = vweird.f32 %v98
    %vm105 = vmor %vm103, %vm104
    %v106 = vsel %vm105, %v98, %v102
    %v107 = vand.u32 2147483647, %v96
    %vm108 = vcmp.eq.f32.partialorder %v107, 8.507059e+37
    %v109 = vand.u32 %v96, 2147483648
    %v110 = vor.u32 1.1754944e-38, %v109
    %v111 = vsel %vm108, %v110, %v106
    %v112 = vmul.f32 1.0, %v111
    %v113 = vrcp.pop %v97
    %v114 = vmul.f32 %v97, %v113
    %v115 = vsub.f32 1.0, %v114
    %v116 = vmul.f32 %v113, %v115
    %v117 = vadd.f32 %v113, %v116
    %vm118 = vweird.f32 %v97
    %vm119 = vweird.f32 %v113
    %vm120 = vmor %vm118, %vm119
    %v121 = vsel %vm120, %v113, %v117
    %v122 = vand.u32 2147483647, %v97
    %vm123 = vcmp.eq.f32.partialorder %v122, 8.507059e+37
    %v124 = vand.u32 %v97, 2147483648
    %v125 = vor.u32 1.1754944e-38, %v124
    %v126 = vsel %vm123, %v125, %v121
    %v127 = vmul.f32 1.0, %v126
    %v128 = vmul.f32 %v85, %v112
    %v129 = vmul.f32 %v88, %v127
    %v130 = vmul.f32 %v62, %v128
    %v131 = vmul.f32 %v65, %v129
    %v132 = vld [vmem:[%s3] sm:$0xff]
    %v133 = vld [vmem:[%s3 + $0x8] sm:$0xff]
    %v134 = vld [vmem:[%s3 + $0x10] sm:$0xff]
    %v135 = vld [vmem:[%s3 + $0x18] sm:$0xff]
    %v136 = vld [vmem:[%s3 + $0x20] sm:$0xff]
    %v137 = vld [vmem:[%s3 + $0x28] sm:$0xff]
    %v138 = vld [vmem:[%s3 + $0x30] sm:$0xff]
    %v139 = vld [vmem:[%s3 + $0x38] sm:$0xff]
    %v140 = vld [vmem:[%s3 + $0x40] sm:$0xff]
    %v141 = vld [vmem:[%s3 + $0x48] sm:$0xff]
    %v142 = vld [vmem:[%s3 + $0x50] sm:$0xff]
    %v143 = vld [vmem:[%s3 + $0x58] sm:$0xff]
    %v144 = vld [vmem:[%s3 + $0x60] sm:$0xff]
    %v145 = vld [vmem:[%s3 + $0x68] sm:$0xff]
    %v146 = vld [vmem:[%s3 + $0x70] sm:$0xff]
    %v147 = vld [vmem:[%s3 + $0x78] sm:$0xff]
    %148 = vmatpush.msra.mxu0 %v147
    %149 = vmatpush.msra.mxu0 %v146
    %150 = vmatpush.msra.mxu0 %v145
    %151 = vmatpush.msra.mxu0 %v144
    %152 = vmatpush.msra.mxu0 %v143
    %153 = vmatpush.msra.mxu0 %v142
    %154 = vmatpush.msra.mxu0 %v141
    %155 = vmatpush.msra.mxu0 %v140
    %156 = vmatpush.msra.mxu0 %v139
    %157 = vmatpush.msra.mxu0 %v138
    %158 = vmatpush.msra.mxu0 %v137
    %159 = vmatpush.msra.mxu0 %v136
    %160 = vmatpush.msra.mxu0 %v135
    %161 = vmatpush.msra.mxu0 %v134
    %162 = vmatpush.msra.mxu0 %v133
    %163 = vmatpush.msra.mxu0 %v132
    %164 = vmatmul.f32.gmra.mxu0 %v130
    %v165 = vpop.f32.mrf.mxu0
    %v166 = vadd.f32 0.0, %v165
    %167 = vmatmul.f32.gmra.mxu0 %v131
    %v168 = vpop.f32.mrf.mxu0
    %v169 = vadd.f32 0.0, %v168
    %170 = vdwg.mxu0
    %p171 = scmp.eq.s32.totalorder 0, 0
    // Predicated region
    $region22: #{tpu_custom_call.1} parent=1 // pred_check
      %p172 = pneg %p171
    $region23: #{tpu_custom_call.1} parent=1 // pred_check_branch
      %174 = sbr.rel (%p172) target = $region25
    $region24: #{tpu_custom_call.1} parent=1 // pred_region
      %175 = vst.msk [vmem:[#allocation2] sm:$0xff] %vm37, %v166
      %176 = vst.msk [vmem:[#allocation2 + $0x8] sm:$0xff] %vm37, %v169
    $region25: #{tpu_custom_call.1} parent=1 // pred_fallthru
      _
    %p177 = scmp.ne.s32.totalorder 0, 0
    // Predicated region
    $region26: #{tpu_custom_call.1} parent=1 // pred_check
      %p178 = pneg %p177
    $region27: #{tpu_custom_call.1} parent=1 // pred_check_branch
      %180 = sbr.rel (%p178) target = $region29
    $region28: #{tpu_custom_call.1} parent=1 // pred_region
      %v181 = vld [vmem:[#allocation2] sm:$0xff]
      %v182 = vld [vmem:[#allocation2 + $0x8] sm:$0xff]
      %v183 = vadd.f32 %v181, %v166
      %v184 = vadd.f32 %v182, %v169
      %185 = vst.msk [vmem:[#allocation2] sm:$0xff] %vm37, %v183
      %186 = vst.msk [vmem:[#allocation2 + $0x8] sm:$0xff] %vm37, %v184
    $region29: #{tpu_custom_call.1} parent=1 // pred_fallthru
      _
    // Predicated region
    $region30: #{tpu_custom_call.1} parent=1 // pred_check
      %p187 = pneg %p171
    $region31: #{tpu_custom_call.1} parent=1 // pred_check_branch
      %189 = sbr.rel (%p187) target = $region33
    $region32: #{tpu_custom_call.1} parent=1 // pred_region
      %v190 = vld [vmem:[#allocation2] sm:$0xff]
      %v191 = vld [vmem:[#allocation2 + $0x8] sm:$0xff]
      %v192 = vld [vmem:[%s4] sm:$0x1]
      %v194 = vperm.slane %v192, 0
      %v196 = vadd.f32 %v190, %v194
      %v197 = vadd.f32 %v191, %v194
      %198 = vst.msk [vmem:[#allocation3] sm:$0xff] %vm37, %v196
      %199 = vst.msk [vmem:[#allocation3 + $0x8] sm:$0xff] %vm37, %v197
    $region33: #{tpu_custom_call.1} parent=1 // pred_fallthru
      _
    // Predicated region
    $region34: #{tpu_custom_call.1} parent=1 // pred_check
      _
    $region35: #{tpu_custom_call.1} parent=1 // pred_check_branch
      %201 = sbr.rel (0) target = $region37
    $region36: #{tpu_custom_call.1} parent=1 // pred_region
      %203 = vsyncadd [#allocation4], 0
      %s204 = sshll.u32 [#allocation3], 4
      %s205 = int_to_ptr.vmem [resolvable:$true] %s204
      %s206 = sshll.u32 %s5, 4
      %s207 = int_to_ptr.hbm [resolvable:$true] %s206
      %212 = dma.vmem_to_hbm [thread:$0]  %s205, 256, %s207, [#allocation4], 128, 128, 8
    $region37: #{tpu_custom_call.1} parent=1 // pred_fallthru
      _
    // Predicated region
    $region38: #{tpu_custom_call.1} parent=1 // pred_check
      _
    $region39: #{tpu_custom_call.1} parent=1 // pred_check_branch
      %214 = sbr.rel (0) target = $region41
    $region40: #{tpu_custom_call.1} parent=1 // pred_region
      %216 = dma.done [#allocation4], 256
    $region41: #{tpu_custom_call.1} parent=1 // pred_fallthru
      _
    %217 = vsyncpa [#allocation4], 1

</llo_original>
